<compile_context>
chip_gen: v7x
topology: tpu7x:2x2x1
jax: 0.10.0
libtpu: 0.0.40
codegen_flags: <defaults>
</compile_context>

<pallas_src>
import functools

import jax
import jax.numpy as jnp
from jax import lax
from jax.experimental import pallas as pl
from jax.experimental.pallas import tpu as pltpu

_F32_MIN = float(jnp.finfo(jnp.float32).min)


def _ce_kernel(logits_ref, target_ref, out_ref, m_sc, s_sc, t_sc, *, num_classes):
    """One (batch-tile, class-tile) grid step of online-logsumexp cross entropy.

    logits_ref: (TN, TC) native dtype   target_ref: (TN, 1) int32
    out_ref:    (TN, 1) f32 per-sample loss (written on the last class tile)
    m_sc/s_sc/t_sc: (TN, 1) f32 running max / running sum-exp / target logit
    """
    ci = pl.program_id(1)
    last_c = pl.num_programs(1) - 1
    tn, tc = logits_ref.shape
    ragged_c = (num_classes % tc) != 0          # static Python bool

    @pl.when(ci == 0)
    def _init():
        # Large *finite* negative (not -inf): keeps exp(m_prev - m_new) and
        # exp(x - m_new) NaN-free even if a whole row of logits is -inf.
        m_sc[...] = jnp.full(m_sc.shape, _F32_MIN, dtype=m_sc.dtype)
        s_sc[...] = jnp.zeros_like(s_sc)
        t_sc[...] = jnp.zeros_like(t_sc)

    logits = logits_ref[...].astype(jnp.float32)      # upcast on load (VPU)
    tgt = target_ref[...]                             # (TN, 1) int32

    # Local lane index compared against the per-row shifted target / a scalar
    # limit -> no per-element global-offset add (saves a VALU op per element).
    local_col = lax.broadcasted_iota(jnp.int32, (tn, tc), 1)
    tgt_local = tgt - ci * tc                         # (TN, 1)

    # Target-logit gather (no one-hot).  In-range targets (0 <= t < C) can
    # never match a padded class column, so no validity mask is needed here.
    # NOTE: out-of-range targets silently contribute 0 (row loss = lse), which
    # is outside the stated default-CrossEntropyLoss scope.
    t_sc[...] += jnp.sum(jnp.where(local_col == tgt_local, logits, 0.0),
                         axis=-1, keepdims=True)

    def _accumulate(x):
        m_prev = m_sc[...]
        m_new = jnp.maximum(m_prev, jnp.max(x, axis=-1, keepdims=True))
        alpha = jnp.exp(m_prev - m_new)               # finite: m init is finite
        p = jnp.exp(x - m_new)                        # exp(-inf) == 0 for padded cols
        s_sc[...] = alpha * s_sc[...] + jnp.sum(p, axis=-1, keepdims=True)
        m_sc[...] = m_new

    if ragged_c:
        # Only the statically-ragged last class tile pays for the per-element
        # compare + select mask; full tiles stream straight through.
        @pl.when(ci == last_c)
        def _ragged_tile():
            limit = num_classes - ci * tc             # scalar
            x = jnp.where(local_col < limit, logits, -jnp.inf)
            _accumulate(x)

        @pl.when(ci != last_c)
        def _full_tile():
            _accumulate(logits)
    else:
        _accumulate(logits)

    @pl.when(ci == last_c)
    def _finalize():
        # Padded rows of the last batch tile hold garbage here; benign because
        # their writeback is masked (output array only has N rows).
        lse = m_sc[...] + jnp.log(s_sc[...])
        out_ref[...] = (lse - t_sc[...]).astype(out_ref.dtype)


def _vmem_capacity_bytes():
    try:
        return int(pltpu.get_tpu_info().vmem_capacity_bytes)
    except Exception:  # pragma: no cover - conservative fallback
        return 128 * 1024 * 1024


def _round_up(x, m):
    return ((x + m - 1) // m) * m


def _pick_blocks(n, c, itemsize, vmem_cap):
    small_vmem = vmem_cap <= 96 * 1024 * 1024           # v7x: 64 MiB / TC
    # Per-buffer budget in f32-equivalent bytes (kernel upcasts the tile, and
    # live f32 intermediates scale with the f32 tile size).
    tile_budget = (3 if small_vmem else 8) * 1024 * 1024

    # Class tile: full C if modest, else 128-multiple chunks (masking + online
    # logsumexp handle any ragged remainder).
    block_c = c if c <= 8192 else 2048
    # Sublane packing: 8 rows for 4-byte, 16 for 2-byte, 32 for 1-byte dtypes.
    round_to = {1: 32, 2: 16}.get(itemsize, 8)

    # f32-equivalent bytes per tile row: the upcast logits row plus the
    # lane-padded (bn,128) f32 slabs (targets + output double-buffers and the
    # three accumulator scratches ~= 7 slabs -> 7*512 B per row).
    bytes_per_row = block_c * 4 + 7 * 128 * 4
    bn = max(round_to, tile_budget // bytes_per_row)
    bn = min(bn, 4096)
    bn = (bn // round_to) * round_to
    n_padded = _round_up(n, round_to)
    bn = min(bn, n_padded)

    # Guarantee >= 2 batch tiles where possible so both v7x TensorCores get
    # work on the "parallel" batch axis (extra grid step is harmless on 1-TC
    # v5e/v6e).
    if pl.cdiv(n_padded, bn) == 1 and n_padded >= 2 * round_to:
        bn = max(round_to, ((bn // 2) // round_to) * round_to)
    return bn, block_c


def cross_entropy_loss(prediction: jax.Array, target: jax.Array,
                       *, block_n=None, block_c=None) -> jax.Array:
    """prediction: (N, C) logits (any float dtype); target: (N,) int class ids.

    Returns scalar float32 mean cross-entropy loss."""
    n, c = prediction.shape
    target2d = target.astype(jnp.int32).reshape(n, 1)

    itemsize = jnp.dtype(prediction.dtype).itemsize
    vmem_cap = _vmem_capacity_bytes()
    auto_bn, auto_bc = _pick_blocks(n, c, itemsize, vmem_cap)
    bn = block_n if block_n is not None else auto_bn
    bc = block_c if block_c is not None else auto_bc

    grid = (pl.cdiv(n, bn), pl.cdiv(c, bc))

    small_vmem = vmem_cap <= 96 * 1024 * 1024
    vmem_limit = min((40 if small_vmem else 64) * 1024 * 1024,
                     vmem_cap - 8 * 1024 * 1024)

    per_sample = pl.pallas_call(
        functools.partial(_ce_kernel, num_classes=c),
        out_shape=jax.ShapeDtypeStruct((n, 1), jnp.float32),
        grid_spec=pltpu.PrefetchScalarGridSpec(
            num_scalar_prefetch=0,
            grid=grid,
            in_specs=[
                pl.BlockSpec((bn, bc), lambda ni, ci: (ni, ci)),   # logits stream
                pl.BlockSpec((bn, 1), lambda ni, ci: (ni, 0)),     # targets
            ],
            out_specs=pl.BlockSpec((bn, 1), lambda ni, ci: (ni, 0)),
            scratch_shapes=[pltpu.VMEM((bn, 1), jnp.float32)] * 3,
        ),
        compiler_params=pltpu.CompilerParams(
            dimension_semantics=("parallel", "arbitrary"),
            vmem_limit_bytes=vmem_limit,
        ),
    )(prediction, target2d)

    # Mean over the *true* batch size; padded rows are never written back.
    return jnp.sum(per_sample[:, 0]) / jnp.float32(n)


if __name__ == "__main__":
    key = jax.random.PRNGKey(0)

    def ref_ce(pred, tgt):
        pred = pred.astype(jnp.float32)
        lse = jax.nn.logsumexp(pred, axis=-1)
        tgt_logit = jnp.take_along_axis(pred, tgt[:, None].astype(jnp.int32), axis=-1)[:, 0]
        return jnp.mean(lse - tgt_logit)

    # Case 1: small single-tile shape (batch=8, classes=32), float32 logits,
    # auto block picker.
    k1, k2, k3, k4, k5, k6 = jax.random.split(key, 6)
    n1, c1 = 8, 32
    pred1 = jax.random.normal(k1, (n1, c1), dtype=jnp.float32)
    tgt1 = jax.random.randint(k2, (n1,), 0, c1, dtype=jnp.int32)
    loss1 = jax.block_until_ready(cross_entropy_loss(pred1, tgt1))
    ref1 = ref_ce(pred1, tgt1)
    assert jnp.allclose(loss1, ref1, atol=1e-5, rtol=1e-5), (loss1, ref1)

    # Case 2: batch + class tiling with ragged edges (N=20, C=160, forced
    # 8x128 blocks -> padded rows and padded class columns), float32.
    n2, c2 = 20, 160
    pred2 = jax.random.normal(k3, (n2, c2), dtype=jnp.float32)
    tgt2 = jax.random.randint(k4, (n2,), 0, c2, dtype=jnp.int32)
    loss2 = jax.block_until_ready(
        cross_entropy_loss(pred2, tgt2, block_n=8, block_c=128))
    ref2 = ref_ce(pred2, tgt2)
    assert jnp.allclose(loss2, ref2, atol=1e-5, rtol=1e-5), (loss2, ref2)

    # Case 3: bfloat16 logits with ragged batch + class tiles
    # (N=40, C=200, forced 16x128 blocks -> exercises 16-row sublane packing).
    n3, c3 = 40, 200
    pred3 = jax.random.normal(k5, (n3, c3), dtype=jnp.float32).astype(jnp.bfloat16)
    tgt3 = jax.random.randint(k6, (n3,), 0, c3, dtype=jnp.int32)
    loss3 = jax.block_until_ready(
        cross_entropy_loss(pred3, tgt3, block_n=16, block_c=128))
    ref3 = ref_ce(pred3, tgt3)
    assert jnp.allclose(loss3, ref3, atol=1e-4, rtol=1e-4), (loss3, ref3)

    print("KERNEL_OK")
</pallas_src>

<mosaic_0001>
module attributes {stable_mosaic.version = 11 : i64} {
  func.func @_ce_kernel(%arg0: i32, %arg1: i32, %arg2: memref<8x32xf32, #tpu.memory_space<vmem>>, %arg3: memref<8x1xi32, #tpu.memory_space<vmem>>, %arg4: memref<8x1xf32, #tpu.memory_space<vmem>>, %arg5: memref<8x1xf32, #tpu.memory_space<vmem>>, %arg6: memref<8x1xf32, #tpu.memory_space<vmem>>, %arg7: memref<8x1xf32, #tpu.memory_space<vmem>>) attributes {dimension_semantics = [#tpu.dimension_semantics<parallel>, #tpu.dimension_semantics<arbitrary>], iteration_bounds = array<i64: 1, 1>, scalar_prefetch = 0 : i64, scratch_operands = 3 : i64, tpu.core_type = #tpu.core_type<tc>, window_params = [{transform_indices = @transform_0, window_bounds = array<i64: 8, 32>}, {transform_indices = @transform_1, window_bounds = array<i64: 8, 1>}, {transform_indices = @transform_2, window_bounds = array<i64: 8, 1>}]} {
    %c0_i32 = arith.constant 0 : i32
    %0 = arith.cmpi eq, %arg1, %c0_i32 : i32
    %1 = arith.extui %0 : i1 to i32
    %c0_i32_0 = arith.constant 0 : i32
    %2 = arith.cmpi ne, %1, %c0_i32_0 : i32
    scf.if %2 {
      %cst_21 = arith.constant -3.40282347E+38 : f32
      %37 = vector.broadcast %cst_21 : f32 to vector<8x1xf32>
      %c0_22 = arith.constant 0 : index
      %c0_23 = arith.constant 0 : index
      %38 = vector.load %arg5[%c0_22, %c0_23] : memref<8x1xf32, #tpu.memory_space<vmem>>, vector<8x1xf32>
      tpu.vector_store %arg5[%c0_22, %c0_23], %37 {strides = array<i32>} : memref<8x1xf32, #tpu.memory_space<vmem>>, vector<8x1xf32>,
      %cst_24 = arith.constant 0.000000e+00 : f32
      %39 = vector.broadcast %cst_24 : f32 to vector<8x1xf32>
      %c0_25 = arith.constant 0 : index
      %c0_26 = arith.constant 0 : index
      %40 = vector.load %arg6[%c0_25, %c0_26] : memref<8x1xf32, #tpu.memory_space<vmem>>, vector<8x1xf32>
      tpu.vector_store %arg6[%c0_25, %c0_26], %39 {strides = array<i32>} : memref<8x1xf32, #tpu.memory_space<vmem>>, vector<8x1xf32>,
      %cst_27 = arith.constant 0.000000e+00 : f32
      %41 = vector.broadcast %cst_27 : f32 to vector<8x1xf32>
      %c0_28 = arith.constant 0 : index
      %c0_29 = arith.constant 0 : index
      %42 = vector.load %arg7[%c0_28, %c0_29] : memref<8x1xf32, #tpu.memory_space<vmem>>, vector<8x1xf32>
      tpu.vector_store %arg7[%c0_28, %c0_29], %41 {strides = array<i32>} : memref<8x1xf32, #tpu.memory_space<vmem>>, vector<8x1xf32>,
    } else {
    }
    %c0 = arith.constant 0 : index
    %c0_1 = arith.constant 0 : index
    %3 = vector.load %arg2[%c0, %c0_1] : memref<8x32xf32, #tpu.memory_space<vmem>>, vector<8x32xf32>
    %c0_2 = arith.constant 0 : index
    %c0_3 = arith.constant 0 : index
    %4 = vector.load %arg3[%c0_2, %c0_3] : memref<8x1xi32, #tpu.memory_space<vmem>>, vector<8x1xi32>
    %5 = tpu.iota {dimensions = array<i32: 1>} : vector<8x32xi32>
    %c32_i32 = arith.constant 32 : i32
    %6 = arith.muli %arg1, %c32_i32 : i32
    %7 = vector.broadcast %6 : i32 to vector<8x1xi32>
    %8 = arith.subi %4, %7 : vector<8x1xi32>
    %c0_4 = arith.constant 0 : index
    %c0_5 = arith.constant 0 : index
    %9 = vector.load %arg7[%c0_4, %c0_5] : memref<8x1xf32, #tpu.memory_space<vmem>>, vector<8x1xf32>
    %10 = vector.broadcast %8 : vector<8x1xi32> to vector<8x32xi32>
    %11 = arith.cmpi eq, %5, %10 : vector<8x32xi32>
    %cst = arith.constant 0.000000e+00 : f32
    %12 = vector.broadcast %cst : f32 to vector<8x32xf32>
    %13 = arith.select %11, %3, %12 : vector<8x32xi1>, vector<8x32xf32>
    %cst_6 = arith.constant dense<0.000000e+00> : vector<8xf32>
    %14 = vector.multi_reduction <add>, %13, %cst_6 [1] : vector<8x32xf32> to vector<8xf32>
    %15 = vector.shape_cast %14 : vector<8xf32> to vector<8x1xf32>
    %16 = arith.addf %9, %15 : vector<8x1xf32>
    %c0_7 = arith.constant 0 : index
    %c0_8 = arith.constant 0 : index
    %17 = vector.load %arg7[%c0_7, %c0_8] : memref<8x1xf32, #tpu.memory_space<vmem>>, vector<8x1xf32>
    tpu.vector_store %arg7[%c0_7, %c0_8], %16 {strides = array<i32>} : memref<8x1xf32, #tpu.memory_space<vmem>>, vector<8x1xf32>,
    %c0_9 = arith.constant 0 : index
    %c0_10 = arith.constant 0 : index
    %18 = vector.load %arg5[%c0_9, %c0_10] : memref<8x1xf32, #tpu.memory_space<vmem>>, vector<8x1xf32>
    %cst_11 = arith.constant dense<0xFF800000> : vector<8xf32>
    %19 = vector.multi_reduction <maximumf>, %3, %cst_11 [1] : vector<8x32xf32> to vector<8xf32>
    %20 = vector.shape_cast %19 : vector<8xf32> to vector<8x1xf32>
    %21 = arith.maximumf %18, %20 : vector<8x1xf32>
    %22 = arith.subf %18, %21 : vector<8x1xf32>
    %23 = math.exp %22 : vector<8x1xf32>
    %24 = vector.broadcast %21 : vector<8x1xf32> to vector<8x32xf32>
    %25 = arith.subf %3, %24 : vector<8x32xf32>
    %26 = math.exp %25 : vector<8x32xf32>
    %c0_12 = arith.constant 0 : index
    %c0_13 = arith.constant 0 : index
    %27 = vector.load %arg6[%c0_12, %c0_13] : memref<8x1xf32, #tpu.memory_space<vmem>>, vector<8x1xf32>
    %28 = arith.mulf %23, %27 : vector<8x1xf32>
    %cst_14 = arith.constant dense<0.000000e+00> : vector<8xf32>
    %29 = vector.multi_reduction <add>, %26, %cst_14 [1] : vector<8x32xf32> to vector<8xf32>
    %30 = vector.shape_cast %29 : vector<8xf32> to vector<8x1xf32>
    %31 = arith.addf %28, %30 : vector<8x1xf32>
    %c0_15 = arith.constant 0 : index
    %c0_16 = arith.constant 0 : index
    %32 = vector.load %arg6[%c0_15, %c0_16] : memref<8x1xf32, #tpu.memory_space<vmem>>, vector<8x1xf32>
    tpu.vector_store %arg6[%c0_15, %c0_16], %31 {strides = array<i32>} : memref<8x1xf32, #tpu.memory_space<vmem>>, vector<8x1xf32>,
    %c0_17 = arith.constant 0 : index
    %c0_18 = arith.constant 0 : index
    %33 = vector.load %arg5[%c0_17, %c0_18] : memref<8x1xf32, #tpu.memory_space<vmem>>, vector<8x1xf32>
    tpu.vector_store %arg5[%c0_17, %c0_18], %21 {strides = array<i32>} : memref<8x1xf32, #tpu.memory_space<vmem>>, vector<8x1xf32>,
    %c0_i32_19 = arith.constant 0 : i32
    %34 = arith.cmpi eq, %arg1, %c0_i32_19 : i32
    %35 = arith.extui %34 : i1 to i32
    %c0_i32_20 = arith.constant 0 : i32
    %36 = arith.cmpi ne, %35, %c0_i32_20 : i32
    scf.if %36 {
      %c0_21 = arith.constant 0 : index
      %c0_22 = arith.constant 0 : index
      %37 = vector.load %arg5[%c0_21, %c0_22] : memref<8x1xf32, #tpu.memory_space<vmem>>, vector<8x1xf32>
      %c0_23 = arith.constant 0 : index
      %c0_24 = arith.constant 0 : index
      %38 = vector.load %arg6[%c0_23, %c0_24] : memref<8x1xf32, #tpu.memory_space<vmem>>, vector<8x1xf32>
      %39 = math.log %38 : vector<8x1xf32>
      %40 = arith.addf %37, %39 : vector<8x1xf32>
      %c0_25 = arith.constant 0 : index
      %c0_26 = arith.constant 0 : index
      %41 = vector.load %arg7[%c0_25, %c0_26] : memref<8x1xf32, #tpu.memory_space<vmem>>, vector<8x1xf32>
      %42 = arith.subf %40, %41 : vector<8x1xf32>
      %c0_27 = arith.constant 0 : index
      %c0_28 = arith.constant 0 : index
      %43 = vector.load %arg4[%c0_27, %c0_28] : memref<8x1xf32, #tpu.memory_space<vmem>>, vector<8x1xf32>
      tpu.vector_store %arg4[%c0_27, %c0_28], %42 {strides = array<i32>} : memref<8x1xf32, #tpu.memory_space<vmem>>, vector<8x1xf32>,
    } else {
    }
    return
  }
  func.func @transform_0(%arg0: i32, %arg1: i32) -> (i32, i32) {
    %c0_i32 = arith.constant 0 : i32
    return %arg0, %arg1 : i32, i32
  }
  func.func @transform_1(%arg0: i32, %arg1: i32) -> (i32, i32) {
    %c0_i32 = arith.constant 0 : i32
    %c0_i32_0 = arith.constant 0 : i32
    return %arg0, %c0_i32 : i32, i32
  }
  func.func @transform_2(%arg0: i32, %arg1: i32) -> (i32, i32) {
    %c0_i32 = arith.constant 0 : i32
    %c0_i32_0 = arith.constant 0 : i32
    return %arg0, %c0_i32 : i32, i32
  }
}

</mosaic_0001>

<llo_original>
// kernel: tpu_custom_call.1
$region0: #{tpu_custom_call.1}
  #allocation0 [shape = 'u32[]', space=smem, size = 0x4, offset = 0x4, fixed_abs, tag = 'smem constant byte address 0x4 - core index']
  #allocation1 [shape = 'u32[144,128]{1,0:T(1,128)}', space=vmem, size = 0x12000, scoped, tag = 'internal scratch']
  #allocation2 [shape = 'f32[8,1]{1,0:T(8,128)}', space=vmem, size = 0x1000, scoped, tag = 'scratch operand']
  #allocation3 [shape = 'f32[8,1]{1,0:T(8,128)}', space=vmem, size = 0x1000, scoped, tag = 'scratch operand']
  #allocation4 [shape = 'f32[8,1]{1,0:T(8,128)}', space=vmem, size = 0x1000, scoped, tag = 'scratch operand']
  %s0 = inlined_call_operand.hbm [shape: f32[8,32], index: 0, kind: input, shape index: {}]
  %s1 = inlined_call_operand.hbm [shape: s32[8,1], index: 1, kind: input, shape index: {}]
  %s2 = inlined_call_operand.hbm [shape: f32[8,1], index: 2, kind: output, shape index: {}]
  %s3 = sld [smem:[#allocation0]]
  $region34: #{tpu_custom_call.1} parent=0
    _
  %s5 = ssub.s32 1, %s3
  %s6 = scalar_select 0, %s5, %s3
  $region1: #{tpu_custom_call.1} parent=0
    #allocation5 [shape = 'u8[4096]{0}', space=vmem, size = 0x1000, scoped, tag = 'input window, operand 0, single buffered']
    #allocation6 [shape = 's32[1]{0}', space=sflag, size = 0x4, scoped, tag = 'scoped memory for tpu_custom_call.1']
    #allocation7 [shape = 's32[1]{0}', space=sflag, size = 0x4, scoped, tag = 'scoped memory for tpu_custom_call.1']
    #allocation8 [shape = 'u8[4096]{0}', space=vmem, size = 0x1000, scoped, tag = 'input window, operand 1, single buffered']
    #allocation9 [shape = 's32[1]{0}', space=sflag, size = 0x4, scoped, tag = 'scoped memory for tpu_custom_call.1']
    #allocation10 [shape = 'u8[4096]{0}', space=vmem, size = 0x1000, scoped, tag = 'output window, operand 0, single buffered']
    %7 = vsyncpa [#allocation6], 0
    %8 = vsyncpa [#allocation9], 0
    %9 = vsyncpa [#allocation7], 0
    // Predicated region
    $region2: #{tpu_custom_call.1} parent=1 // pred_check
      _
    $region3: #{tpu_custom_call.1} parent=1 // pred_check_branch
      %11 = sbr.rel (0) target = $region5
    $region4: #{tpu_custom_call.1} parent=1 // pred_region
      %s13 = ssub.s32 128, 128
      %14 = vsyncadd [#allocation6], %s13
      %s16 = sshll.u32 [#allocation5], 4
      %s17 = int_to_ptr.vmem [resolvable:$true] %s16
      %19 = dma.hbm_to_vmem [thread:$0]  %s0, 128, %s17, [#allocation6]
    $region5: #{tpu_custom_call.1} parent=1 // pred_fallthru
      _
    // Predicated region
    $region6: #{tpu_custom_call.1} parent=1 // pred_check
      _
    $region7: #{tpu_custom_call.1} parent=1 // pred_check_branch
      %21 = sbr.rel (0) target = $region9
    $region8: #{tpu_custom_call.1} parent=1 // pred_region
      %s23 = ssub.s32 128, 128
      %24 = vsyncadd [#allocation9], %s23
      %s26 = sshll.u32 [#allocation8], 4
      %s27 = int_to_ptr.vmem [resolvable:$true] %s26
      %29 = dma.hbm_to_vmem [thread:$0]  %s1, 128, %s27, [#allocation9]
    $region9: #{tpu_custom_call.1} parent=1 // pred_fallthru
      _
    // Predicated region
    $region10: #{tpu_custom_call.1} parent=1 // pred_check
      _
    $region11: #{tpu_custom_call.1} parent=1 // pred_check_branch
      %31 = sbr.rel (0) target = $region13
    $region12: #{tpu_custom_call.1} parent=1 // pred_region
      %32 = dma.done [#allocation6], 128
    $region13: #{tpu_custom_call.1} parent=1 // pred_fallthru
      _
    // Predicated region
    $region14: #{tpu_custom_call.1} parent=1 // pred_check
      _
    $region15: #{tpu_custom_call.1} parent=1 // pred_check_branch
      %34 = sbr.rel (0) target = $region17
    $region16: #{tpu_custom_call.1} parent=1 // pred_region
      %35 = dma.done [#allocation9], 128
    $region17: #{tpu_custom_call.1} parent=1 // pred_fallthru
      _
    %p36 = scmp.eq.s32.totalorder 0, 0
    // Predicated region
    $region18: #{tpu_custom_call.1} parent=1 // pred_check
      %p37 = pneg %p36
    $region19: #{tpu_custom_call.1} parent=1 // pred_check_branch
      %39 = sbr.rel (%p37) target = $region21
    $region20: #{tpu_custom_call.1} parent=1 // pred_region
      %vm40 = vcmask 7168
      %41 = vst.msk [vmem:[#allocation2] sm:$0xff] %vm40, -3.4028235e+38
      %42 = vst.msk [vmem:[#allocation3] sm:$0xff] %vm40, 0.0
      %43 = vst.msk [vmem:[#allocation4] sm:$0xff] %vm40, 0.0
    $region21: #{tpu_custom_call.1} parent=1 // pred_fallthru
      _
    %v44 = vld [vmem:[#allocation5] sm:$0xff]
    %v45 = vld [vmem:[#allocation8] sm:$0xff]
    %v46 = vlaneseq
    %v47 = vand.u32 %v46, 127
    %s48 = smul.u32 0, 32
    %v49 = vstv %s48
    %v50 = vsub.s32 %v45, %v49
    %v51 = vld [vmem:[#allocation4] sm:$0xff]
    %52 = vset.pattern.permute.xlu0 0
    %53 = vperm.xlu0 %52, %v50
    %v54 = vpop.permute.xlu0 %53
    %vm55 = vcmp.eq.s32.totalorder %v47, %v54
    %v56 = vsel %vm55, %v44, 0.0
    %vm57 = vcmask 261120
    %v58 = vsel %vm57, %v56, 0.0
    %59 = vadd.xlane.f32.xlu0 %v58
    %v60 = vpop.xlane.xlu0 %59
    %v61 = vadd.f32 %v51, %v60
    %vm62 = vcmask 7168
    %63 = vst.msk [vmem:[#allocation4] sm:$0xff] %vm62, %v61
    %v64 = vld [vmem:[#allocation2] sm:$0xff]
    %v65 = vsel %vm57, %v44, -inf
    %66 = vmax.xlane.f32.xlu0 %v65
    %v67 = vpop.xlane.xlu0 %66
    %v68 = vmax.f32 %v64, %v67
    %v69 = vsub.f32 %v64, %v68
    %v70 = vmul.f32 %v69, 1.442695
    %v71 = vpow.pop %v70
    %73 = vset.pattern.permute.xlu0 0
    %74 = vperm.xlu0 %73, %v68
    %v75 = vpop.permute.xlu0 %74
    %v77 = vsub.f32 %v44, %v75
    %v78 = vmul.f32 %v77, 1.442695
    %v79 = vpow.pop %v78
    %v80 = vld [vmem:[#allocation3] sm:$0xff]
    %v81 = vmul.f32 %v71, %v80
    %v82 = vsel %vm57, %v79, 0.0
    %83 = vadd.xlane.f32.xlu0 %v82
    %v84 = vpop.xlane.xlu0 %83
    %v85 = vadd.f32 %v81, %v84
    %86 = vst.msk [vmem:[#allocation3] sm:$0xff] %vm62, %v85
    %87 = vst.msk [vmem:[#allocation2] sm:$0xff] %vm62, %v68
    // Predicated region
    $region22: #{tpu_custom_call.1} parent=1 // pred_check
      %p88 = pneg %p36
    $region23: #{tpu_custom_call.1} parent=1 // pred_check_branch
      %90 = sbr.rel (%p88) target = $region25
    $region24: #{tpu_custom_call.1} parent=1 // pred_region
      %v91 = vld [vmem:[#allocation2] sm:$0xff]
      %v92 = vld [vmem:[#allocation3] sm:$0xff]
      %v93 = vlog2.pop %v92
      %v94 = vmul.f32 %v93, 0.6931472
      %v95 = vadd.f32 %v91, %v94
      %v96 = vld [vmem:[#allocation4] sm:$0xff]
      %v97 = vsub.f32 %v95, %v96
      %98 = vst.msk [vmem:[#allocation10] sm:$0xff] %vm62, %v97
    $region25: #{tpu_custom_call.1} parent=1 // pred_fallthru
      _
    // Predicated region
    $region26: #{tpu_custom_call.1} parent=1 // pred_check
      _
    $region27: #{tpu_custom_call.1} parent=1 // pred_check_branch
      %100 = sbr.rel (0) target = $region29
    $region28: #{tpu_custom_call.1} parent=1 // pred_region
      %s102 = ssub.s32 128, 128
      %103 = vsyncadd [#allocation7], %s102
      %s105 = sshll.u32 [#allocation10], 4
      %s106 = int_to_ptr.vmem [resolvable:$true] %s105
      %108 = dma.vmem_to_hbm [thread:$0]  %s106, 128, %s2, [#allocation7]
    $region29: #{tpu_custom_call.1} parent=1 // pred_fallthru
      _
    // Predicated region
    $region30: #{tpu_custom_call.1} parent=1 // pred_check
      _
    $region31: #{tpu_custom_call.1} parent=1 // pred_check_branch
      %110 = sbr.rel (0) target = $region33
    $region32: #{tpu_custom_call.1} parent=1 // pred_region
      %111 = dma.done [#allocation7], 128
    $region33: #{tpu_custom_call.1} parent=1 // pred_fallthru
      _
    %112 = vsyncpa [#allocation6], 1
    %113 = vsyncpa [#allocation9], 1
    %114 = vsyncpa [#allocation7], 1

</llo_original>
